<compile_context>
chip_gen: v5e
topology: v5e:2x2
jax: 0.10.0
libtpu: 0.0.40
codegen_flags: <defaults>
</compile_context>

<pallas_src>
import jax
import jax.numpy as jnp
from jax import lax
from jax.experimental import pallas as pl
from jax.experimental.pallas import tpu as pltpu


def _elu_f32(x):
    # F.elu with alpha=1.0:  x if x > 0 else exp(x) - 1  (exp only sees the clamped value,
    # so the discarded branch never overflows).
    # TODO(synk): switch to jnp.expm1 for better accuracy near 0 once verified in Mosaic.
    return jnp.where(x > 0, x, jnp.exp(jnp.minimum(x, 0.0)) - 1.0)


def discriminator_kernel(x_ref,
                         w1_ref, b1_ref,
                         w2_ref, b2_ref,
                         w3_ref, b3_ref,
                         w4_ref, b4_ref,
                         out_ref):
    cdt = w1_ref.dtype                       # matmul operand dtype (f32 by default)

    x = x_ref[...].astype(cdt)               # (block_b, input_dim); cast (if any) after DMA

    # Layer 1: h1_t[f, b] = sum_k w1[f, k] * x[b, k]  ->  (hidden1, block_b), batch on lanes.
    h = lax.dot_general(w1_ref[...], x,
                        dimension_numbers=(((1,), (1,)), ((), ())),
                        preferred_element_type=jnp.float32)
    h = _elu_f32(h + b1_ref[...])            # (hidden1, block_b) f32, lane-dense elementwise

    h = jnp.dot(w2_ref[...], h.astype(cdt), preferred_element_type=jnp.float32)
    h = _elu_f32(h + b2_ref[...])            # (hidden2, block_b)

    h = jnp.dot(w3_ref[...], h.astype(cdt), preferred_element_type=jnp.float32)
    h = _elu_f32(h + b3_ref[...])            # (hidden3, block_b)

    # Output layer: (1, hidden3) @ (hidden3, block_b) -> lane-dense (1, block_b) logits row.
    y = jnp.dot(w4_ref[...], h.astype(cdt), preferred_element_type=jnp.float32)
    out_ref[...] = (y + b4_ref[...]).astype(out_ref.dtype)


def _round_up(n, m):
    return ((n + m - 1) // m) * m


def _choose_block_b(b_pad, cap=4096):
    """Largest multiple of 128 that divides b_pad, is <= cap, and (when the batch permits)
    leaves >=2 grid steps so v7x's two TensorCores both get work on the 'parallel' axis."""
    n128 = b_pad // 128
    best = 128
    for m in range(1, n128 + 1):
        blk = 128 * m
        if blk > cap:
            break
        if n128 % m != 0:
            continue
        steps = n128 // m
        if n128 >= 2 and steps < 2:
            continue
        best = blk
    return best


def _const_spec(arr):
    # Whole (small) parameter resident in VMEM for every grid step (grid-invariant block).
    ndim = arr.ndim
    return pl.BlockSpec(arr.shape, lambda i: (0,) * ndim)


def discriminator_forward(x, params, *, compute_dtype=jnp.float32,
                          block_b=None, block_b_cap=4096):
    """x: (B, input_dim) float32.  params: w1..w4 stored (out_features, in_features)
    (native PyTorch nn.Linear layout), b1..b4 stored (out_features, 1).
    Returns (B, 1) float32 logits, matching DiscriminatorNet.forward."""
    B, input_dim = x.shape

    # Pad batch only to a multiple of 128 (lane-dense tiles, waste <= 127 rows), then pick a
    # block size that divides the padded batch.
    b_pad = _round_up(B, 128)
    if block_b is None:
        block_b = _choose_block_b(b_pad, block_b_cap)
    assert block_b % 128 == 0, "block_b must be a multiple of 128 (lane-dense tiles)"
    b_pad = _round_up(b_pad, block_b)

    if b_pad != B:
        x = jnp.pad(x, ((0, b_pad - B), (0, 0)))   # padded rows are sliced off below

    # Weights in (out, in) layout; cast (if bf16 requested) once at the boundary — they are
    # tiny (~60 KB) and stay resident.  Biases are (out, 1) column vectors, f32.
    w1 = params["w1"].astype(compute_dtype)
    w2 = params["w2"].astype(compute_dtype)
    w3 = params["w3"].astype(compute_dtype)
    w4 = params["w4"].astype(compute_dtype)
    b1 = params["b1"].astype(jnp.float32)
    b2 = params["b2"].astype(jnp.float32)
    b3 = params["b3"].astype(jnp.float32)
    b4 = params["b4"].astype(jnp.float32)

    grid = (b_pad // block_b,)

    out_t = pl.pallas_call(
        discriminator_kernel,
        out_shape=jax.ShapeDtypeStruct((1, b_pad), jnp.float32),
        grid_spec=pltpu.PrefetchScalarGridSpec(
            num_scalar_prefetch=0,
            grid=grid,
            in_specs=[
                pl.BlockSpec((block_b, input_dim), lambda i: (i, 0)),
                _const_spec(w1), _const_spec(b1),
                _const_spec(w2), _const_spec(b2),
                _const_spec(w3), _const_spec(b3),
                _const_spec(w4), _const_spec(b4),
            ],
            out_specs=pl.BlockSpec((1, block_b), lambda i: (0, i)),
        ),
        compiler_params=pltpu.CompilerParams(
            # Per-step VMEM is small even at block_b=4096, so the scoped default is plenty
            # on every generation (incl. v7x's 64 MiB physical / 32 MiB scoped).
            dimension_semantics=("parallel",),
        ),
    )(x, w1, b1, w2, b2, w3, b3, w4, b4)

    return out_t[0, :B][:, None]            # back to (B, 1)


def init_params(key, input_dim, hidden_dim1, hidden_dim2, hidden_dim3):
    """Deterministic synthetic init; weights stored (out, in) like nn.Linear.weight."""
    dims = [(input_dim, hidden_dim1),
            (hidden_dim1, hidden_dim2),
            (hidden_dim2, hidden_dim3),
            (hidden_dim3, 1)]
    params = {}
    keys = jax.random.split(key, 2 * len(dims))
    for idx, (fan_in, fan_out) in enumerate(dims):
        kw, kb = keys[2 * idx], keys[2 * idx + 1]
        bound = 1.0 / jnp.sqrt(jnp.float32(fan_in))
        params[f"w{idx+1}"] = jax.random.uniform(
            kw, (fan_out, fan_in), jnp.float32, -bound, bound)
        params[f"b{idx+1}"] = jax.random.uniform(
            kb, (fan_out, 1), jnp.float32, -bound, bound)
    return params


def reference_forward(x, params):
    h = x
    for i in range(1, 4):
        h = h @ params[f"w{i}"].T + params[f"b{i}"].T
        h = jnp.where(h > 0, h, jnp.exp(jnp.minimum(h, 0.0)) - 1.0)
    return h @ params["w4"].T + params["b4"].T


if __name__ == "__main__":
    key = jax.random.PRNGKey(0)
    k_x, k_x2, k_p = jax.random.split(key, 3)

    # small shapes consistent with the module's forward
    batch, input_dim = 8, 32
    hidden_dim1, hidden_dim2, hidden_dim3 = 64, 48, 32

    params = init_params(k_p, input_dim, hidden_dim1, hidden_dim2, hidden_dim3)

    # --- small batch (single grid step) ---
    x = jax.random.normal(k_x, (batch, input_dim), jnp.float32)
    ref = reference_forward(x, params)
    out = jax.block_until_ready(discriminator_forward(x, params))
    assert out.shape == (batch, 1)
    assert jnp.allclose(out, ref, atol=1e-4, rtol=1e-4)

    # --- larger, non-multiple-of-128 batch (multi-step grid + padding path) ---
    batch2 = 300
    x2 = jax.random.normal(k_x2, (batch2, input_dim), jnp.float32)
    ref2 = reference_forward(x2, params)
    out2 = jax.block_until_ready(discriminator_forward(x2, params))
    assert out2.shape == (batch2, 1)
    assert jnp.allclose(out2, ref2, atol=1e-4, rtol=1e-4)

    # --- optional bf16 matmul-operand path (loose tolerance vs the f32 reference) ---
    out_bf16 = jax.block_until_ready(
        discriminator_forward(x, params, compute_dtype=jnp.bfloat16))
    assert out_bf16.shape == (batch, 1)
    assert jnp.allclose(out_bf16, ref, atol=1e-1, rtol=1e-1)

    print("KERNEL_OK")
</pallas_src>

<mosaic_0001>
module attributes {stable_mosaic.version = 11 : i64} {
  func.func @discriminator_kernel(%arg0: i32, %arg1: memref<128x32xf32, #tpu.memory_space<vmem>>, %arg2: memref<64x32xf32, #tpu.memory_space<vmem>>, %arg3: memref<64x1xf32, #tpu.memory_space<vmem>>, %arg4: memref<48x64xf32, #tpu.memory_space<vmem>>, %arg5: memref<48x1xf32, #tpu.memory_space<vmem>>, %arg6: memref<32x48xf32, #tpu.memory_space<vmem>>, %arg7: memref<32x1xf32, #tpu.memory_space<vmem>>, %arg8: memref<1x32xf32, #tpu.memory_space<vmem>>, %arg9: memref<1x1xf32, #tpu.memory_space<vmem>>, %arg10: memref<1x128xf32, #tpu.memory_space<vmem>>) attributes {dimension_semantics = [#tpu.dimension_semantics<parallel>], iteration_bounds = array<i64: 1>, scalar_prefetch = 0 : i64, scratch_operands = 0 : i64, tpu.core_type = #tpu.core_type<tc>, window_params = [{transform_indices = @transform_0, window_bounds = array<i64: 128, 32>}, {pipeline_mode = #tpu.pipeline_mode<synchronous>, transform_indices = @transform_1, window_bounds = array<i64: 64, 32>}, {pipeline_mode = #tpu.pipeline_mode<synchronous>, transform_indices = @transform_2, window_bounds = array<i64: 64, 1>}, {pipeline_mode = #tpu.pipeline_mode<synchronous>, transform_indices = @transform_3, window_bounds = array<i64: 48, 64>}, {pipeline_mode = #tpu.pipeline_mode<synchronous>, transform_indices = @transform_4, window_bounds = array<i64: 48, 1>}, {pipeline_mode = #tpu.pipeline_mode<synchronous>, transform_indices = @transform_5, window_bounds = array<i64: 32, 48>}, {pipeline_mode = #tpu.pipeline_mode<synchronous>, transform_indices = @transform_6, window_bounds = array<i64: 32, 1>}, {pipeline_mode = #tpu.pipeline_mode<synchronous>, transform_indices = @transform_7, window_bounds = array<i64: 1, 32>}, {pipeline_mode = #tpu.pipeline_mode<synchronous>, transform_indices = @transform_8, window_bounds = array<i64: 1, 1>}, {transform_indices = @transform_9, window_bounds = array<i64: 1, 128>}]} {
    %c0 = arith.constant 0 : index
    %c0_0 = arith.constant 0 : index
    %0 = vector.load %arg1[%c0, %c0_0] : memref<128x32xf32, #tpu.memory_space<vmem>>, vector<128x32xf32>
    %c0_1 = arith.constant 0 : index
    %c0_2 = arith.constant 0 : index
    %1 = vector.load %arg2[%c0_1, %c0_2] : memref<64x32xf32, #tpu.memory_space<vmem>>, vector<64x32xf32>
    %cst = arith.constant dense<0.000000e+00> : vector<64x128xf32>
    %2 = tpu.matmul %1, %0, %cst {dimension_numbers = #tpu.dot_dimension_numbers<[1], [1], [0], [0], [0, 0, 1, 0], [], []>} : vector<64x32xf32>, vector<128x32xf32>, vector<64x128xf32> -> vector<64x128xf32>
    %c0_3 = arith.constant 0 : index
    %c0_4 = arith.constant 0 : index
    %3 = vector.load %arg3[%c0_3, %c0_4] : memref<64x1xf32, #tpu.memory_space<vmem>>, vector<64x1xf32>
    %4 = vector.broadcast %3 : vector<64x1xf32> to vector<64x128xf32>
    %5 = arith.addf %2, %4 : vector<64x128xf32>
    %cst_5 = arith.constant 0.000000e+00 : f32
    %6 = vector.broadcast %cst_5 : f32 to vector<64x128xf32>
    %7 = arith.cmpf ogt, %5, %6 : vector<64x128xf32>
    %cst_6 = arith.constant 0.000000e+00 : f32
    %8 = vector.broadcast %cst_6 : f32 to vector<64x128xf32>
    %9 = arith.minimumf %5, %8 : vector<64x128xf32>
    %10 = math.exp %9 : vector<64x128xf32>
    %cst_7 = arith.constant 1.000000e+00 : f32
    %11 = vector.broadcast %cst_7 : f32 to vector<64x128xf32>
    %12 = arith.subf %10, %11 : vector<64x128xf32>
    %13 = arith.select %7, %5, %12 : vector<64x128xi1>, vector<64x128xf32>
    %c0_8 = arith.constant 0 : index
    %c0_9 = arith.constant 0 : index
    %14 = vector.load %arg4[%c0_8, %c0_9] : memref<48x64xf32, #tpu.memory_space<vmem>>, vector<48x64xf32>
    %cst_10 = arith.constant dense<0.000000e+00> : vector<48x128xf32>
    %15 = tpu.matmul %14, %13, %cst_10 {dimension_numbers = #tpu.dot_dimension_numbers<[1], [0], [0], [1], [0, 0, 1, 1], [], []>} : vector<48x64xf32>, vector<64x128xf32>, vector<48x128xf32> -> vector<48x128xf32>
    %c0_11 = arith.constant 0 : index
    %c0_12 = arith.constant 0 : index
    %16 = vector.load %arg5[%c0_11, %c0_12] : memref<48x1xf32, #tpu.memory_space<vmem>>, vector<48x1xf32>
    %17 = vector.broadcast %16 : vector<48x1xf32> to vector<48x128xf32>
    %18 = arith.addf %15, %17 : vector<48x128xf32>
    %cst_13 = arith.constant 0.000000e+00 : f32
    %19 = vector.broadcast %cst_13 : f32 to vector<48x128xf32>
    %20 = arith.cmpf ogt, %18, %19 : vector<48x128xf32>
    %cst_14 = arith.constant 0.000000e+00 : f32
    %21 = vector.broadcast %cst_14 : f32 to vector<48x128xf32>
    %22 = arith.minimumf %18, %21 : vector<48x128xf32>
    %23 = math.exp %22 : vector<48x128xf32>
    %cst_15 = arith.constant 1.000000e+00 : f32
    %24 = vector.broadcast %cst_15 : f32 to vector<48x128xf32>
    %25 = arith.subf %23, %24 : vector<48x128xf32>
    %26 = arith.select %20, %18, %25 : vector<48x128xi1>, vector<48x128xf32>
    %c0_16 = arith.constant 0 : index
    %c0_17 = arith.constant 0 : index
    %27 = vector.load %arg6[%c0_16, %c0_17] : memref<32x48xf32, #tpu.memory_space<vmem>>, vector<32x48xf32>
    %cst_18 = arith.constant dense<0.000000e+00> : vector<32x128xf32>
    %28 = tpu.matmul %27, %26, %cst_18 {dimension_numbers = #tpu.dot_dimension_numbers<[1], [0], [0], [1], [0, 0, 1, 1], [], []>} : vector<32x48xf32>, vector<48x128xf32>, vector<32x128xf32> -> vector<32x128xf32>
    %c0_19 = arith.constant 0 : index
    %c0_20 = arith.constant 0 : index
    %29 = vector.load %arg7[%c0_19, %c0_20] : memref<32x1xf32, #tpu.memory_space<vmem>>, vector<32x1xf32>
    %30 = vector.broadcast %29 : vector<32x1xf32> to vector<32x128xf32>
    %31 = arith.addf %28, %30 : vector<32x128xf32>
    %cst_21 = arith.constant 0.000000e+00 : f32
    %32 = vector.broadcast %cst_21 : f32 to vector<32x128xf32>
    %33 = arith.cmpf ogt, %31, %32 : vector<32x128xf32>
    %cst_22 = arith.constant 0.000000e+00 : f32
    %34 = vector.broadcast %cst_22 : f32 to vector<32x128xf32>
    %35 = arith.minimumf %31, %34 : vector<32x128xf32>
    %36 = math.exp %35 : vector<32x128xf32>
    %cst_23 = arith.constant 1.000000e+00 : f32
    %37 = vector.broadcast %cst_23 : f32 to vector<32x128xf32>
    %38 = arith.subf %36, %37 : vector<32x128xf32>
    %39 = arith.select %33, %31, %38 : vector<32x128xi1>, vector<32x128xf32>
    %c0_24 = arith.constant 0 : index
    %c0_25 = arith.constant 0 : index
    %40 = vector.load %arg8[%c0_24, %c0_25] : memref<1x32xf32, #tpu.memory_space<vmem>>, vector<1x32xf32>
    %cst_26 = arith.constant dense<0.000000e+00> : vector<1x128xf32>
    %41 = tpu.matmul %40, %39, %cst_26 {dimension_numbers = #tpu.dot_dimension_numbers<[1], [0], [0], [1], [0, 0, 1, 1], [], []>} : vector<1x32xf32>, vector<32x128xf32>, vector<1x128xf32> -> vector<1x128xf32>
    %c0_27 = arith.constant 0 : index
    %c0_28 = arith.constant 0 : index
    %42 = vector.load %arg9[%c0_27, %c0_28] : memref<1x1xf32, #tpu.memory_space<vmem>>, vector<1x1xf32>
    %43 = vector.broadcast %42 : vector<1x1xf32> to vector<1x128xf32>
    %44 = arith.addf %41, %43 : vector<1x128xf32>
    %c0_29 = arith.constant 0 : index
    %c0_30 = arith.constant 0 : index
    %45 = vector.load %arg10[%c0_29, %c0_30] : memref<1x128xf32, #tpu.memory_space<vmem>>, vector<1x128xf32>
    tpu.vector_store %arg10[%c0_29, %c0_30], %44 {strides = array<i32>} : memref<1x128xf32, #tpu.memory_space<vmem>>, vector<1x128xf32>,
    return
  }
  func.func @transform_0(%arg0: i32) -> (i32, i32) {
    %c0_i32 = arith.constant 0 : i32
    %c0_i32_0 = arith.constant 0 : i32
    return %arg0, %c0_i32 : i32, i32
  }
  func.func @transform_1(%arg0: i32) -> (i32, i32) {
    %c0_i32 = arith.constant 0 : i32
    %c0_i32_0 = arith.constant 0 : i32
    %c0_i32_1 = arith.constant 0 : i32
    return %c0_i32, %c0_i32_0 : i32, i32
  }
  func.func @transform_2(%arg0: i32) -> (i32, i32) {
    %c0_i32 = arith.constant 0 : i32
    %c0_i32_0 = arith.constant 0 : i32
    %c0_i32_1 = arith.constant 0 : i32
    return %c0_i32, %c0_i32_0 : i32, i32
  }
  func.func @transform_3(%arg0: i32) -> (i32, i32) {
    %c0_i32 = arith.constant 0 : i32
    %c0_i32_0 = arith.constant 0 : i32
    %c0_i32_1 = arith.constant 0 : i32
    return %c0_i32, %c0_i32_0 : i32, i32
  }
  func.func @transform_4(%arg0: i32) -> (i32, i32) {
    %c0_i32 = arith.constant 0 : i32
    %c0_i32_0 = arith.constant 0 : i32
    %c0_i32_1 = arith.constant 0 : i32
    return %c0_i32, %c0_i32_0 : i32, i32
  }
  func.func @transform_5(%arg0: i32) -> (i32, i32) {
    %c0_i32 = arith.constant 0 : i32
    %c0_i32_0 = arith.constant 0 : i32
    %c0_i32_1 = arith.constant 0 : i32
    return %c0_i32, %c0_i32_0 : i32, i32
  }
  func.func @transform_6(%arg0: i32) -> (i32, i32) {
    %c0_i32 = arith.constant 0 : i32
    %c0_i32_0 = arith.constant 0 : i32
    %c0_i32_1 = arith.constant 0 : i32
    return %c0_i32, %c0_i32_0 : i32, i32
  }
  func.func @transform_7(%arg0: i32) -> (i32, i32) {
    %c0_i32 = arith.constant 0 : i32
    %c0_i32_0 = arith.constant 0 : i32
    %c0_i32_1 = arith.constant 0 : i32
    return %c0_i32, %c0_i32_0 : i32, i32
  }
  func.func @transform_8(%arg0: i32) -> (i32, i32) {
    %c0_i32 = arith.constant 0 : i32
    %c0_i32_0 = arith.constant 0 : i32
    %c0_i32_1 = arith.constant 0 : i32
    return %c0_i32, %c0_i32_0 : i32, i32
  }
  func.func @transform_9(%arg0: i32) -> (i32, i32) {
    %c0_i32 = arith.constant 0 : i32
    %c0_i32_0 = arith.constant 0 : i32
    return %c0_i32, %arg0 : i32, i32
  }
}

</mosaic_0001>

<llo_original>
// kernel: tpu_custom_call.1
$region0: #{tpu_custom_call.1}
  #allocation0 [shape = 'u32[]', space=smem, size = 0x4, offset = 0x4, fixed_abs, tag = 'smem constant byte address 0x4 - core index']
  #allocation1 [shape = 'u32[72,128]{1,0:T(1,128)}', space=vmem, size = 0x9000, scoped, tag = 'internal scratch']
  #allocation2 [shape = 'f32[1,1]{1,0:T(1,128)S(1)}', space=vmem, size = 0x200, scoped, tag = 'scoped memory for tpu_custom_call.1']
  %s0 = inlined_call_operand.vmem [shape: f32[128,32], index: 0, kind: input, shape index: {}]
  %s1 = inlined_call_operand.vmem [shape: f32[64,32], index: 1, kind: input, shape index: {}]
  %s2 = inlined_call_operand.vmem [shape: f32[64,1], index: 2, kind: input, shape index: {}]
  %s3 = inlined_call_operand.vmem [shape: f32[48,64], index: 3, kind: input, shape index: {}]
  %s4 = inlined_call_operand.vmem [shape: f32[48,1], index: 4, kind: input, shape index: {}]
  %s5 = inlined_call_operand.vmem [shape: f32[32,48], index: 5, kind: input, shape index: {}]
  %s6 = inlined_call_operand.vmem [shape: f32[32,1], index: 6, kind: input, shape index: {}]
  %s7 = inlined_call_operand.vmem [shape: f32[1,32], index: 7, kind: input, shape index: {}]
  %s8 = inlined_call_operand.<no memory space> [shape: f32[1,1], index: 8, kind: input, shape index: {}]
  %s9 = inlined_call_operand.hbm [shape: f32[1,128], index: 9, kind: output, shape index: {}]
  %s10 = sld [smem:[#allocation0]]
  $region46: #{tpu_custom_call.1} parent=0
    _
  %s12 = ssub.s32 1, %s10
  %s13 = scalar_select 0, %s12, %s10
  %v14 = vstv %s8
  %15 = vst [vmem:[#allocation2] sm:$0x1] %v14
  $region1: #{tpu_custom_call.1} parent=0
    #allocation3 [shape = 'u8[512]{0}', space=vmem, size = 0x400, scoped, tag = 'output window, operand 0, single buffered']
    #allocation4 [shape = 's32[1]{0}', space=sflag, size = 0x4, scoped, tag = 'scoped memory for tpu_custom_call.1']
    %16 = vsyncpa [#allocation4], 0
    // Predicated region
    $region2: #{tpu_custom_call.1} parent=1 // pred_check
      _
    $region3: #{tpu_custom_call.1} parent=1 // pred_check_branch
      %18 = sbr.rel (0) target = $region5
    $region4: #{tpu_custom_call.1} parent=1 // pred_region
      _
    $region5: #{tpu_custom_call.1} parent=1 // pred_fallthru
      _
    // Predicated region
    $region6: #{tpu_custom_call.1} parent=1 // pred_check
      _
    $region7: #{tpu_custom_call.1} parent=1 // pred_check_branch
      %20 = sbr.rel (0) target = $region9
    $region8: #{tpu_custom_call.1} parent=1 // pred_region
      _
    $region9: #{tpu_custom_call.1} parent=1 // pred_fallthru
      _
    // Predicated region
    $region10: #{tpu_custom_call.1} parent=1 // pred_check
      _
    $region11: #{tpu_custom_call.1} parent=1 // pred_check_branch
      %22 = sbr.rel (0) target = $region13
    $region12: #{tpu_custom_call.1} parent=1 // pred_region
      _
    $region13: #{tpu_custom_call.1} parent=1 // pred_fallthru
      _
    // Predicated region
    $region14: #{tpu_custom_call.1} parent=1 // pred_check
      _
    $region15: #{tpu_custom_call.1} parent=1 // pred_check_branch
      %24 = sbr.rel (0) target = $region17
    $region16: #{tpu_custom_call.1} parent=1 // pred_region
      _
    $region17: #{tpu_custom_call.1} parent=1 // pred_fallthru
      _
    // Predicated region
    $region18: #{tpu_custom_call.1} parent=1 // pred_check
      _
    $region19: #{tpu_custom_call.1} parent=1 // pred_check_branch
      %26 = sbr.rel (0) target = $region21
    $region20: #{tpu_custom_call.1} parent=1 // pred_region
      _
    $region21: #{tpu_custom_call.1} parent=1 // pred_fallthru
      _
    // Predicated region
    $region22: #{tpu_custom_call.1} parent=1 // pred_check
      _
    $region23: #{tpu_custom_call.1} parent=1 // pred_check_branch
      %28 = sbr.rel (0) target = $region25
    $region24: #{tpu_custom_call.1} parent=1 // pred_region
      _
    $region25: #{tpu_custom_call.1} parent=1 // pred_fallthru
      _
    // Predicated region
    $region26: #{tpu_custom_call.1} parent=1 // pred_check
      _
    $region27: #{tpu_custom_call.1} parent=1 // pred_check_branch
      %30 = sbr.rel (0) target = $region29
    $region28: #{tpu_custom_call.1} parent=1 // pred_region
      _
    $region29: #{tpu_custom_call.1} parent=1 // pred_fallthru
      _
    // Predicated region
    $region30: #{tpu_custom_call.1} parent=1 // pred_check
      _
    $region31: #{tpu_custom_call.1} parent=1 // pred_check_branch
      %32 = sbr.rel (0) target = $region33
    $region32: #{tpu_custom_call.1} parent=1 // pred_region
      _
    $region33: #{tpu_custom_call.1} parent=1 // pred_fallthru
      _
    // Predicated region
    $region34: #{tpu_custom_call.1} parent=1 // pred_check
      _
    $region35: #{tpu_custom_call.1} parent=1 // pred_check_branch
      %34 = sbr.rel (0) target = $region37
    $region36: #{tpu_custom_call.1} parent=1 // pred_region
      _
    $region37: #{tpu_custom_call.1} parent=1 // pred_fallthru
      _
    %v35 = vld [vmem:[%s0] sm:$0xff]
    %v36 = vld [vmem:[%s0 + $0x8] sm:$0xff]
    %v37 = vld [vmem:[%s0 + $0x10] sm:$0xff]
    %v38 = vld [vmem:[%s0 + $0x18] sm:$0xff]
    %v39 = vld [vmem:[%s0 + $0x20] sm:$0xff]
    %v40 = vld [vmem:[%s0 + $0x28] sm:$0xff]
    %v41 = vld [vmem:[%s0 + $0x30] sm:$0xff]
    %v42 = vld [vmem:[%s0 + $0x38] sm:$0xff]
    %v43 = vld [vmem:[%s0 + $0x40] sm:$0xff]
    %v44 = vld [vmem:[%s0 + $0x48] sm:$0xff]
    %v45 = vld [vmem:[%s0 + $0x50] sm:$0xff]
    %v46 = vld [vmem:[%s0 + $0x58] sm:$0xff]
    %v47 = vld [vmem:[%s0 + $0x60] sm:$0xff]
    %v48 = vld [vmem:[%s0 + $0x68] sm:$0xff]
    %v49 = vld [vmem:[%s0 + $0x70] sm:$0xff]
    %v50 = vld [vmem:[%s0 + $0x78] sm:$0xff]
    %v51 = vld [vmem:[%s1] sm:$0xff]
    %v52 = vld [vmem:[%s1 + $0x8] sm:$0xff]
    %v53 = vld [vmem:[%s1 + $0x10] sm:$0xff]
    %v54 = vld [vmem:[%s1 + $0x18] sm:$0xff]
    %v55 = vld [vmem:[%s1 + $0x20] sm:$0xff]
    %v56 = vld [vmem:[%s1 + $0x28] sm:$0xff]
    %v57 = vld [vmem:[%s1 + $0x30] sm:$0xff]
    %v58 = vld [vmem:[%s1 + $0x38] sm:$0xff]
    %v59 = vld [vmem:[%s2] sm:$0xff]
    %v60 = vld [vmem:[%s2 + $0x8] sm:$0xff]
    %v61 = vld [vmem:[%s2 + $0x10] sm:$0xff]
    %v62 = vld [vmem:[%s2 + $0x18] sm:$0xff]
    %v63 = vld [vmem:[%s2 + $0x20] sm:$0xff]
    %v64 = vld [vmem:[%s2 + $0x28] sm:$0xff]
    %v65 = vld [vmem:[%s2 + $0x30] sm:$0xff]
    %v66 = vld [vmem:[%s2 + $0x38] sm:$0xff]
    %68 = vset.pattern.permute.xlu0 0
    %69 = vperm.xlu0 %68, %v59
    %v70 = vpop.permute.xlu0 %69
    %73 = vset.pattern.permute.xlu0 0
    %74 = vperm.xlu0 %73, %v60
    %v75 = vpop.permute.xlu0 %74
    %78 = vset.pattern.permute.xlu0 0
    %79 = vperm.xlu0 %78, %v61
    %v80 = vpop.permute.xlu0 %79
    %83 = vset.pattern.permute.xlu0 0
    %84 = vperm.xlu0 %83, %v62
    %v85 = vpop.permute.xlu0 %84
    %88 = vset.pattern.permute.xlu0 0
    %89 = vperm.xlu0 %88, %v63
    %v90 = vpop.permute.xlu0 %89
    %93 = vset.pattern.permute.xlu0 0
    %94 = vperm.xlu0 %93, %v64
    %v95 = vpop.permute.xlu0 %94
    %98 = vset.pattern.permute.xlu0 0
    %99 = vperm.xlu0 %98, %v65
    %v100 = vpop.permute.xlu0 %99
    %103 = vset.pattern.permute.xlu0 0
    %104 = vperm.xlu0 %103, %v66
    %v105 = vpop.permute.xlu0 %104
    %vm107 = vcmask 261120
    %v109 = vsel %vm107, %v51, 0
    %v112 = vsel %vm107, %v52, 0
    %v115 = vsel %vm107, %v53, 0
    %v118 = vsel %vm107, %v54, 0
    %v121 = vsel %vm107, %v55, 0
    %v124 = vsel %vm107, %v56, 0
    %v127 = vsel %vm107, %v57, 0
    %v130 = vsel %vm107, %v58, 0
    %v133 = vsel %vm107, %v35, 0
    %v136 = vsel %vm107, %v36, 0
    %v139 = vsel %vm107, %v37, 0
    %v142 = vsel %vm107, %v38, 0
    %v145 = vsel %vm107, %v39, 0
    %v148 = vsel %vm107, %v40, 0
    %v151 = vsel %vm107, %v41, 0
    %v154 = vsel %vm107, %v42, 0
    %v157 = vsel %vm107, %v43, 0
    %v160 = vsel %vm107, %v44, 0
    %v163 = vsel %vm107, %v45, 0
    %v166 = vsel %vm107, %v46, 0
    %v169 = vsel %vm107, %v47, 0
    %v172 = vsel %vm107, %v48, 0
    %v175 = vsel %vm107, %v49, 0
    %v178 = vsel %vm107, %v50, 0
    %180 = vmatpush.xpose.msra.mxu0 %v178
    %181 = vmatpush.xpose.msra.mxu0 %v175
    %182 = vmatpush.xpose.msra.mxu0 %v172
    %183 = vmatpush.xpose.msra.mxu0 %v169
    %184 = vmatpush.xpose.msra.mxu0 %v166
    %185 = vmatpush.xpose.msra.mxu0 %v163
    %186 = vmatpush.xpose.msra.mxu0 %v160
    %187 = vmatpush.xpose.msra.mxu0 %v157
    %188 = vmatpush.xpose.msra.mxu0 %v154
    %189 = vmatpush.xpose.msra.mxu0 %v151
    %190 = vmatpush.xpose.msra.mxu0 %v148
    %191 = vmatpush.xpose.msra.mxu0 %v145
    %192 = vmatpush.xpose.msra.mxu0 %v142
    %193 = vmatpush.xpose.msra.mxu0 %v139
    %194 = vmatpush.xpose.msra.mxu0 %v136
    %195 = vmatpush.xpose.msra.mxu0 %v133
    %196 = vmatmul.f32.gmra.mxu0 %v109
    %v197 = vpop.f32.mrf.mxu0
    %v198 = vadd.f32 %v70, %v197
    %199 = vmatmul.f32.gmra.mxu0 %v112
    %v200 = vpop.f32.mrf.mxu0
    %v201 = vadd.f32 %v75, %v200
    %202 = vmatmul.f32.gmra.mxu0 %v115
    %v203 = vpop.f32.mrf.mxu0
    %v204 = vadd.f32 %v80, %v203
    %205 = vmatmul.f32.gmra.mxu0 %v118
    %v206 = vpop.f32.mrf.mxu0
    %v207 = vadd.f32 %v85, %v206
    %208 = vmatmul.f32.gmra.mxu0 %v121
    %v209 = vpop.f32.mrf.mxu0
    %v210 = vadd.f32 %v90, %v209
    %211 = vmatmul.f32.gmra.mxu0 %v124
    %v212 = vpop.f32.mrf.mxu0
    %v213 = vadd.f32 %v95, %v212
    %214 = vmatmul.f32.gmra.mxu0 %v127
    %v215 = vpop.f32.mrf.mxu0
    %v216 = vadd.f32 %v100, %v215
    %217 = vmatmul.f32.gmra.mxu0 %v130
    %v218 = vpop.f32.mrf.mxu0
    %v219 = vadd.f32 %v105, %v218
    %220 = vdwg.mxu0
    %vm221 = vcmp.gt.f32.partialorder %v198, 0.0
    %vm222 = vcmp.gt.f32.partialorder %v201, 0.0
    %vm223 = vcmp.gt.f32.partialorder %v204, 0.0
    %vm224 = vcmp.gt.f32.partialorder %v207, 0.0
    %vm225 = vcmp.gt.f32.partialorder %v210, 0.0
    %vm226 = vcmp.gt.f32.partialorder %v213, 0.0
    %vm227 = vcmp.gt.f32.partialorder %v216, 0.0
    %vm228 = vcmp.gt.f32.partialorder %v219, 0.0
    %v229 = vmin.f32 %v198, 0.0
    %v230 = vmin.f32 %v201, 0.0
    %v231 = vmin.f32 %v204, 0.0
    %v232 = vmin.f32 %v207, 0.0
    %v233 = vmin.f32 %v210, 0.0
    %v234 = vmin.f32 %v213, 0.0
    %v235 = vmin.f32 %v216, 0.0
    %v236 = vmin.f32 %v219, 0.0
    %v237 = vmul.f32 %v229, 1.442695
    %v238 = vpow.pop %v237
    %v239 = vmul.f32 %v230, 1.442695
    %v240 = vpow.pop %v239
    %v241 = vmul.f32 %v231, 1.442695
    %v242 = vpow.pop %v241
    %v243 = vmul.f32 %v232, 1.442695
    %v244 = vpow.pop %v243
    %v245 = vmul.f32 %v233, 1.442695
    %v246 = vpow.pop %v245
    %v247 = vmul.f32 %v234, 1.442695
    %v248 = vpow.pop %v247
    %v249 = vmul.f32 %v235, 1.442695
    %v250 = vpow.pop %v249
    %v251 = vmul.f32 %v236, 1.442695
    %v252 = vpow.pop %v251
    %v253 = vsub.f32 %v238, 1.0
    %v254 = vsub.f32 %v240, 1.0
    %v255 = vsub.f32 %v242, 1.0
    %v256 = vsub.f32 %v244, 1.0
    %v257 = vsub.f32 %v246, 1.0
    %v258 = vsub.f32 %v248, 1.0
    %v259 = vsub.f32 %v250, 1.0
    %v260 = vsub.f32 %v252, 1.0
    %v261 = vsel %vm221, %v198, %v253
    %v262 = vsel %vm222, %v201, %v254
    %v263 = vsel %vm223, %v204, %v255
    %v264 = vsel %vm224, %v207, %v256
    %v265 = vsel %vm225, %v210, %v257
    %v266 = vsel %vm226, %v213, %v258
    %v267 = vsel %vm227, %v216, %v259
    %v268 = vsel %vm228, %v219, %v260
    %v269 = vld [vmem:[%s3] sm:$0xff]
    %v270 = vld [vmem:[%s3 + $0x8] sm:$0xff]
    %v271 = vld [vmem:[%s3 + $0x10] sm:$0xff]
    %v272 = vld [vmem:[%s3 + $0x18] sm:$0xff]
    %v273 = vld [vmem:[%s3 + $0x20] sm:$0xff]
    %v274 = vld [vmem:[%s3 + $0x28] sm:$0xff]
    %v275 = vld [vmem:[%s4] sm:$0xff]
    %v276 = vld [vmem:[%s4 + $0x8] sm:$0xff]
    %v277 = vld [vmem:[%s4 + $0x10] sm:$0xff]
    %v278 = vld [vmem:[%s4 + $0x18] sm:$0xff]
    %v279 = vld [vmem:[%s4 + $0x20] sm:$0xff]
    %v280 = vld [vmem:[%s4 + $0x28] sm:$0xff]
    %282 = vset.pattern.permute.xlu0 0
    %283 = vperm.xlu0 %282, %v275
    %v284 = vpop.permute.xlu0 %283
    %287 = vset.pattern.permute.xlu0 0
    %288 = vperm.xlu0 %287, %v276
    %v289 = vpop.permute.xlu0 %288
    %292 = vset.pattern.permute.xlu0 0
    %293 = vperm.xlu0 %292, %v277
    %v294 = vpop.permute.xlu0 %293
    %297 = vset.pattern.permute.xlu0 0
    %298 = vperm.xlu0 %297, %v278
    %v299 = vpop.permute.xlu0 %298
    %302 = vset.pattern.permute.xlu0 0
    %303 = vperm.xlu0 %302, %v279
    %v304 = vpop.permute.xlu0 %303
    %307 = vset.pattern.permute.xlu0 0
    %308 = vperm.xlu0 %307, %v280
    %v309 = vpop.permute.xlu0 %308
    %vm311 = vcmask 523264
    %v313 = vsel %vm311, %v269, 0
    %v316 = vsel %vm311, %v270, 0
    %v319 = vsel %vm311, %v271, 0
    %v322 = vsel %vm311, %v272, 0
    %v325 = vsel %vm311, %v273, 0
    %v328 = vsel %vm311, %v274, 0
    %330 = vmatpush.msra.mxu0 0.0
    %331 = vmatpush.msra.mxu0 0.0
    %332 = vmatpush.msra.mxu0 0.0
    %333 = vmatpush.msra.mxu0 0.0
    %334 = vmatpush.msra.mxu0 0.0
    %335 = vmatpush.msra.mxu0 0.0
    %336 = vmatpush.msra.mxu0 0.0
    %337 = vmatpush.msra.mxu0 0.0
    %338 = vmatpush.msra.mxu0 %v268
    %339 = vmatpush.msra.mxu0 %v267
    %340 = vmatpush.msra.mxu0 %v266
    %341 = vmatpush.msra.mxu0 %v265
    %342 = vmatpush.msra.mxu0 %v264
    %343 = vmatpush.msra.mxu0 %v263
    %344 = vmatpush.msra.mxu0 %v262
    %345 = vmatpush.msra.mxu0 %v261
    %346 = vmatmul.f32.gmra.mxu0 %v313
    %v347 = vpop.f32.mrf.mxu0
    %v348 = vadd.f32 %v284, %v347
    %349 = vmatmul.f32.gmra.mxu0 %v316
    %v350 = vpop.f32.mrf.mxu0
    %v351 = vadd.f32 %v289, %v350
    %352 = vmatmul.f32.gmra.mxu0 %v319
    %v353 = vpop.f32.mrf.mxu0
    %v354 = vadd.f32 %v294, %v353
    %355 = vmatmul.f32.gmra.mxu0 %v322
    %v356 = vpop.f32.mrf.mxu0
    %v357 = vadd.f32 %v299, %v356
    %358 = vmatmul.f32.gmra.mxu0 %v325
    %v359 = vpop.f32.mrf.mxu0
    %v360 = vadd.f32 %v304, %v359
    %361 = vmatmul.f32.gmra.mxu0 %v328
    %v362 = vpop.f32.mrf.mxu0
    %v363 = vadd.f32 %v309, %v362
    %364 = vdwg.mxu0
    %vm365 = vcmp.gt.f32.partialorder %v348, 0.0
    %vm366 = vcmp.gt.f32.partialorder %v351, 0.0
    %vm367 = vcmp.gt.f32.partialorder %v354, 0.0
    %vm368 = vcmp.gt.f32.partialorder %v357, 0.0
    %vm369 = vcmp.gt.f32.partialorder %v360, 0.0
    %vm370 = vcmp.gt.f32.partialorder %v363, 0.0
    %v371 = vmin.f32 %v348, 0.0
    %v372 = vmin.f32 %v351, 0.0
    %v373 = vmin.f32 %v354, 0.0
    %v374 = vmin.f32 %v357, 0.0
    %v375 = vmin.f32 %v360, 0.0
    %v376 = vmin.f32 %v363, 0.0
    %v377 = vmul.f32 %v371, 1.442695
    %v378 = vpow.pop %v377
    %v379 = vmul.f32 %v372, 1.442695
    %v380 = vpow.pop %v379
    %v381 = vmul.f32 %v373, 1.442695
    %v382 = vpow.pop %v381
    %v383 = vmul.f32 %v374, 1.442695
    %v384 = vpow.pop %v383
    %v385 = vmul.f32 %v375, 1.442695
    %v386 = vpow.pop %v385
    %v387 = vmul.f32 %v376, 1.442695
    %v388 = vpow.pop %v387
    %v389 = vsub.f32 %v378, 1.0
    %v390 = vsub.f32 %v380, 1.0
    %v391 = vsub.f32 %v382, 1.0
    %v392 = vsub.f32 %v384, 1.0
    %v393 = vsub.f32 %v386, 1.0
    %v394 = vsub.f32 %v388, 1.0
    %v395 = vsel %vm365, %v348, %v389
    %v396 = vsel %vm366, %v351, %v390
    %v397 = vsel %vm367, %v354, %v391
    %v398 = vsel %vm368, %v357, %v392
    %v399 = vsel %vm369, %v360, %v393
    %v400 = vsel %vm370, %v363, %v394
    %v401 = vld [vmem:[%s5] sm:$0xff]
    %v402 = vld [vmem:[%s5 + $0x8] sm:$0xff]
    %v403 = vld [vmem:[%s5 + $0x10] sm:$0xff]
    %v404 = vld [vmem:[%s5 + $0x18] sm:$0xff]
    %v405 = vld [vmem:[%s6] sm:$0xff]
    %v406 = vld [vmem:[%s6 + $0x8] sm:$0xff]
    %v407 = vld [vmem:[%s6 + $0x10] sm:$0xff]
    %v408 = vld [vmem:[%s6 + $0x18] sm:$0xff]
    %410 = vset.pattern.permute.xlu0 0
    %411 = vperm.xlu0 %410, %v405
    %v412 = vpop.permute.xlu0 %411
    %415 = vset.pattern.permute.xlu0 0
    %416 = vperm.xlu0 %415, %v406
    %v417 = vpop.permute.xlu0 %416
    %420 = vset.pattern.permute.xlu0 0
    %421 = vperm.xlu0 %420, %v407
    %v422 = vpop.permute.xlu0 %421
    %425 = vset.pattern.permute.xlu0 0
    %426 = vperm.xlu0 %425, %v408
    %v427 = vpop.permute.xlu0 %426
    %vm429 = vcmask 392192
    %v431 = vsel %vm429, %v401, 0
    %v434 = vsel %vm429, %v402, 0
    %v437 = vsel %vm429, %v403, 0
    %v440 = vsel %vm429, %v404, 0
    %442 = vmatpush.msra.mxu0 0.0
    %443 = vmatpush.msra.mxu0 0.0
    %444 = vmatpush.msra.mxu0 0.0
    %445 = vmatpush.msra.mxu0 0.0
    %446 = vmatpush.msra.mxu0 0.0
    %447 = vmatpush.msra.mxu0 0.0
    %448 = vmatpush.msra.mxu0 0.0
    %449 = vmatpush.msra.mxu0 0.0
    %450 = vmatpush.msra.mxu0 0.0
    %451 = vmatpush.msra.mxu0 0.0
    %452 = vmatpush.msra.mxu0 %v400
    %453 = vmatpush.msra.mxu0 %v399
    %454 = vmatpush.msra.mxu0 %v398
    %455 = vmatpush.msra.mxu0 %v397
    %456 = vmatpush.msra.mxu0 %v396
    %457 = vmatpush.msra.mxu0 %v395
    %458 = vmatmul.f32.gmra.mxu0 %v431
    %v459 = vpop.f32.mrf.mxu0
    %v460 = vadd.f32 %v412, %v459
    %461 = vmatmul.f32.gmra.mxu0 %v434
    %v462 = vpop.f32.mrf.mxu0
    %v463 = vadd.f32 %v417, %v462
    %464 = vmatmul.f32.gmra.mxu0 %v437
    %v465 = vpop.f32.mrf.mxu0
    %v466 = vadd.f32 %v422, %v465
    %467 = vmatmul.f32.gmra.mxu0 %v440
    %v468 = vpop.f32.mrf.mxu0
    %v469 = vadd.f32 %v427, %v468
    %470 = vdwg.mxu0
    %vm471 = vcmp.gt.f32.partialorder %v460, 0.0
    %vm472 = vcmp.gt.f32.partialorder %v463, 0.0
    %vm473 = vcmp.gt.f32.partialorder %v466, 0.0
    %vm474 = vcmp.gt.f32.partialorder %v469, 0.0
    %v475 = vmin.f32 %v460, 0.0
    %v476 = vmin.f32 %v463, 0.0
    %v477 = vmin.f32 %v466, 0.0
    %v478 = vmin.f32 %v469, 0.0
    %v479 = vmul.f32 %v475, 1.442695
    %v480 = vpow.pop %v479
    %v481 = vmul.f32 %v476, 1.442695
    %v482 = vpow.pop %v481
    %v483 = vmul.f32 %v477, 1.442695
    %v484 = vpow.pop %v483
    %v485 = vmul.f32 %v478, 1.442695
    %v486 = vpow.pop %v485
    %v487 = vsub.f32 %v480, 1.0
    %v488 = vsub.f32 %v482, 1.0
    %v489 = vsub.f32 %v484, 1.0
    %v490 = vsub.f32 %v486, 1.0
    %v491 = vsel %vm471, %v460, %v487
    %v492 = vsel %vm472, %v463, %v488
    %v493 = vsel %vm473, %v466, %v489
    %v494 = vsel %vm474, %v469, %v490
    %v495 = vld [vmem:[%s7] sm:$0x1]
    %v496 = vld [vmem:[#allocation2] sm:$0x1]
    %498 = vset.pattern.permute.xlu0 0
    %499 = vperm.xlu0 %498, %v496
    %v500 = vpop.permute.xlu0 %499
    %v502 = vperm.slane %v500, 0
    %v504 = vsel %vm107, %v495, 0
    %506 = vmatpush.msra.mxu0 0.0
    %507 = vmatpush.msra.mxu0 0.0
    %508 = vmatpush.msra.mxu0 0.0
    %509 = vmatpush.msra.mxu0 0.0
    %510 = vmatpush.msra.mxu0 0.0
    %511 = vmatpush.msra.mxu0 0.0
    %512 = vmatpush.msra.mxu0 0.0
    %513 = vmatpush.msra.mxu0 0.0
    %514 = vmatpush.msra.mxu0 0.0
    %515 = vmatpush.msra.mxu0 0.0
    %516 = vmatpush.msra.mxu0 0.0
    %517 = vmatpush.msra.mxu0 0.0
    %518 = vmatpush.msra.mxu0 %v494
    %519 = vmatpush.msra.mxu0 %v493
    %520 = vmatpush.msra.mxu0 %v492
    %521 = vmatpush.msra.mxu0 %v491
    %522 = vmatmul.f32.gmra.mxu0 %v504
    %v523 = vpop.f32.mrf.mxu0
    %v524 = vadd.f32 %v502, %v523
    %525 = vdwg.mxu0
    %526 = vst [vmem:[#allocation3] sm:$0x1] %v524
    // Predicated region
    $region38: #{tpu_custom_call.1} parent=1 // pred_check
      _
    $region39: #{tpu_custom_call.1} parent=1 // pred_check_branch
      %528 = sbr.rel (0) target = $region41
    $region40: #{tpu_custom_call.1} parent=1 // pred_region
      %530 = vsyncadd [#allocation4], 0
      %s532 = sshll.u32 [#allocation3], 4
      %s533 = int_to_ptr.vmem [resolvable:$true] %s532
      %s534 = sshll.u32 %s9, 4
      %s535 = int_to_ptr.hbm [resolvable:$true] %s534
      %537 = dma.vmem_to_hbm [thread:$0]  %s533, 16, %s535, [#allocation4]
    $region41: #{tpu_custom_call.1} parent=1 // pred_fallthru
      _
    // Predicated region
    $region42: #{tpu_custom_call.1} parent=1 // pred_check
      _
    $region43: #{tpu_custom_call.1} parent=1 // pred_check_branch
      %539 = sbr.rel (0) target = $region45
    $region44: #{tpu_custom_call.1} parent=1 // pred_region
      %541 = dma.done [#allocation4], 16
    $region45: #{tpu_custom_call.1} parent=1 // pred_fallthru
      _
    %542 = vsyncpa [#allocation4], 1

</llo_original>
